<compile_context>
chip_gen: v5e
topology: v5e:2x2
jax: 0.10.0
libtpu: 0.0.40
codegen_flags: <defaults>
</compile_context>

<pallas_src>
import functools

import jax
import jax.numpy as jnp
from jax.experimental import pallas as pl
from jax.experimental.pallas import tpu as pltpu


def _topk_err_kernel(k, yhat_ref, tgt_ref, partial_ref):
    """Per-tile count of rows whose target class is in the top-k of the logits.

    Softmax is strictly monotone per row, so top-k membership on softmax(yhat)
    equals top-k membership on raw yhat; we rank the logits directly (no exp,
    no row-sum, no divide). Padded rows carry target = -1 and never count.
    """
    x = yhat_ref[...].astype(jnp.float32)            # (TB, C)
    tgt = tgt_ref[...]                               # (TB, 1) int32, -1 for padding
    TB, C = x.shape

    col = jax.lax.broadcasted_iota(jnp.int32, (TB, C), 1)

    # logit of the target class (one-hot masked lane reduce; avoids a gather).
    tp = jnp.max(jnp.where(col == tgt, x, -jnp.inf), axis=1, keepdims=True)  # (TB, 1)

    # rank of the target among all classes; ties broken toward lower indices,
    # matching torch.topk first-occurrence ordering. Integer rank counting.
    greater = (x > tp).astype(jnp.int32)
    tie_before = jnp.logical_and(x == tp, col < tgt).astype(jnp.int32)
    rank = jnp.sum(greater + tie_before, axis=1, keepdims=True)              # (TB, 1)

    correct = (rank < k).astype(jnp.float32)                                 # (TB, 1)
    partial = jnp.sum(correct)                       # rows of this tile in the top-k

    # lane-dense (1, 1, 128) store (unmasked vst); wrapper reads lane 0 per block.
    partial_ref[...] = jnp.broadcast_to(partial, partial_ref.shape)


def _round_up(x, m):
    return (x + m - 1) // m * m


def error_rate_t5(yhat, y, k):
    """JAX/Pallas equivalent of ErrorRate_T5.forward.

    yhat: (B, C) logits (any float dtype, passed at native dtype),
    y: (B, C, 1) scores / one-hot labels. Returns the top-k error rate in %.
    """
    B, C = yhat.shape
    k_eff = int(min(int(k), C))                      # torch.topk requires k <= C

    # glue: target = argmax(y.squeeze(2), dim=1). Done once in XLA so the (B, C)
    # one-hot never flows through the kernel (halves kernel HBM traffic).
    labels = jnp.argmax(jnp.squeeze(y, axis=2), axis=1).astype(jnp.int32)    # (B,)

    # Batch tiling: TB is a multiple of 16 (f32/bf16 sublane safe), capped so the
    # double-buffered yhat tiles stay well inside v7x's smaller scoped-VMEM budget.
    esize = jnp.dtype(yhat.dtype).itemsize
    vmem_budget = 8 * 1024 * 1024                    # conservative per-input budget
    tb_from_vmem = max(16, (vmem_budget // max(1, 2 * C * esize)) // 16 * 16)
    TB = int(max(16, min(1024, tb_from_vmem, _round_up(B, 16))))
    B_pad = _round_up(B, TB)
    G = B_pad // TB

    # Padded rows get label -1 -> target logit = -inf -> rank = C >= k -> never counted.
    yhat_p = jnp.pad(yhat, ((0, B_pad - B), (0, 0)))
    labels_p = jnp.pad(labels, ((0, B_pad - B),), constant_values=-1).reshape(B_pad, 1)

    kernel = functools.partial(_topk_err_kernel, k_eff)
    partials = pl.pallas_call(
        kernel,
        out_shape=jax.ShapeDtypeStruct((G, 1, 128), jnp.float32),
        grid=(G,),
        in_specs=[
            pl.BlockSpec((TB, C), lambda i: (i, 0)),   # native dtype, no wrapper cast
            pl.BlockSpec((TB, 1), lambda i: (i, 0)),   # 4 B/row labels
        ],
        out_specs=pl.BlockSpec((1, 1, 128), lambda i: (i, 0, 0)),
        compiler_params=pltpu.CompilerParams(
            dimension_semantics=("parallel",),         # independent per-block partials
        ),
    )(yhat_p, labels_p)

    correct = jnp.sum(partials[:, 0, 0])               # tiny XLA reduce over G blocks
    acc = correct / jnp.float32(B)                     # torch.sum(preds == target) / B
    err = (1.0 - acc) * 100.0
    return err


if __name__ == "__main__":
    key = jax.random.PRNGKey(0)
    k_logits, k_labels = jax.random.split(key)

    B, C, K = 8, 32, 3
    yhat = jax.random.normal(k_logits, (B, C), dtype=jnp.float32)
    labels = jax.random.randint(k_labels, (B,), 0, C)
    y = jax.nn.one_hot(labels, C, dtype=jnp.float32)[:, :, None]   # (B, C, 1)

    err = error_rate_t5(yhat, y, K)
    err = jax.block_until_ready(err)

    # pure-JAX reference (softmax is monotone, so top-k of logits == top-k of probs)
    probs = jax.nn.softmax(yhat, axis=1)
    topk_idx = jax.lax.top_k(probs, K)[1]
    tgt = jnp.argmax(jnp.squeeze(y, 2), axis=1)
    acc_ref = jnp.sum(topk_idx == tgt[:, None]) / B
    err_ref = (1.0 - acc_ref) * 100.0
    assert abs(float(err) - float(err_ref)) < 1e-4, (float(err), float(err_ref))

    print("KERNEL_OK")
</pallas_src>

<mosaic_0001>
module attributes {stable_mosaic.version = 11 : i64} {
  func.func @_topk_err_kernel(%arg0: i32, %arg1: memref<16x32xf32, #tpu.memory_space<vmem>>, %arg2: memref<16x1xi32, #tpu.memory_space<vmem>>, %arg3: memref<1x1x128xf32, #tpu.memory_space<vmem>>) attributes {dimension_semantics = [#tpu.dimension_semantics<parallel>], iteration_bounds = array<i64: 1>, scalar_prefetch = 0 : i64, scratch_operands = 0 : i64, tpu.core_type = #tpu.core_type<tc>, window_params = [{transform_indices = @transform_0, window_bounds = array<i64: 16, 32>}, {transform_indices = @transform_1, window_bounds = array<i64: 16, 1>}, {transform_indices = @transform_2, window_bounds = array<i64: 1, 1, 128>}]} {
    %c0 = arith.constant 0 : index
    %c0_0 = arith.constant 0 : index
    %0 = vector.load %arg1[%c0, %c0_0] : memref<16x32xf32, #tpu.memory_space<vmem>>, vector<16x32xf32>
    %c0_1 = arith.constant 0 : index
    %c0_2 = arith.constant 0 : index
    %1 = vector.load %arg2[%c0_1, %c0_2] : memref<16x1xi32, #tpu.memory_space<vmem>>, vector<16x1xi32>
    %2 = tpu.iota {dimensions = array<i32: 1>} : vector<16x32xi32>
    %3 = vector.broadcast %1 : vector<16x1xi32> to vector<16x32xi32>
    %4 = arith.cmpi eq, %2, %3 : vector<16x32xi32>
    %cst = arith.constant 0xFF800000 : f32
    %5 = vector.broadcast %cst : f32 to vector<16x32xf32>
    %6 = arith.select %4, %0, %5 : vector<16x32xi1>, vector<16x32xf32>
    %cst_3 = arith.constant dense<0xFF800000> : vector<16xf32>
    %7 = vector.multi_reduction <maximumf>, %6, %cst_3 [1] : vector<16x32xf32> to vector<16xf32>
    %8 = vector.shape_cast %7 : vector<16xf32> to vector<16x1xf32>
    %9 = vector.broadcast %8 : vector<16x1xf32> to vector<16x32xf32>
    %10 = arith.cmpf ogt, %0, %9 : vector<16x32xf32>
    %11 = arith.extui %10 : vector<16x32xi1> to vector<16x32xi32>
    %12 = vector.broadcast %8 : vector<16x1xf32> to vector<16x32xf32>
    %13 = arith.cmpf oeq, %0, %12 : vector<16x32xf32>
    %14 = vector.broadcast %1 : vector<16x1xi32> to vector<16x32xi32>
    %15 = arith.cmpi slt, %2, %14 : vector<16x32xi32>
    %16 = arith.andi %13, %15 : vector<16x32xi1>
    %17 = arith.extui %16 : vector<16x32xi1> to vector<16x32xi32>
    %18 = arith.addi %11, %17 : vector<16x32xi32>
    %cst_4 = arith.constant dense<0> : vector<16xi32>
    %19 = vector.multi_reduction <add>, %18, %cst_4 [1] : vector<16x32xi32> to vector<16xi32>
    %20 = vector.shape_cast %19 : vector<16xi32> to vector<16x1xi32>
    %c3_i32 = arith.constant 3 : i32
    %21 = vector.broadcast %c3_i32 : i32 to vector<16x1xi32>
    %22 = arith.cmpi slt, %20, %21 : vector<16x1xi32>
    %23 = arith.extui %22 : vector<16x1xi1> to vector<16x1xi32>
    %24 = arith.sitofp %23 : vector<16x1xi32> to vector<16x1xf32>
    %25 = vector.shape_cast %24 : vector<16x1xf32> to vector<1x16x1xf32>
    %cst_5 = arith.constant dense<0.000000e+00> : vector<1xf32>
    %26 = vector.multi_reduction <add>, %25, %cst_5 [1, 2] : vector<1x16x1xf32> to vector<1xf32>
    %27 = vector.shape_cast %26 : vector<1xf32> to vector<1x1x1xf32>
    %28 = vector.extract %27[0, 0, 0] : f32 from vector<1x1x1xf32>
    %29 = vector.broadcast %28 : f32 to vector<1x1x128xf32>
    %c0_6 = arith.constant 0 : index
    %c0_7 = arith.constant 0 : index
    %c0_8 = arith.constant 0 : index
    %30 = vector.load %arg3[%c0_6, %c0_7, %c0_8] : memref<1x1x128xf32, #tpu.memory_space<vmem>>, vector<1x1x128xf32>
    tpu.vector_store %arg3[%c0_6, %c0_7, %c0_8], %29 {strides = array<i32>} : memref<1x1x128xf32, #tpu.memory_space<vmem>>, vector<1x1x128xf32>,
    return
  }
  func.func @transform_0(%arg0: i32) -> (i32, i32) {
    %c0_i32 = arith.constant 0 : i32
    %c0_i32_0 = arith.constant 0 : i32
    return %arg0, %c0_i32 : i32, i32
  }
  func.func @transform_1(%arg0: i32) -> (i32, i32) {
    %c0_i32 = arith.constant 0 : i32
    %c0_i32_0 = arith.constant 0 : i32
    return %arg0, %c0_i32 : i32, i32
  }
  func.func @transform_2(%arg0: i32) -> (i32, i32, i32) {
    %c0_i32 = arith.constant 0 : i32
    %c0_i32_0 = arith.constant 0 : i32
    %c0_i32_1 = arith.constant 0 : i32
    return %arg0, %c0_i32, %c0_i32_0 : i32, i32, i32
  }
}

</mosaic_0001>

<llo_original>
// kernel: tpu_custom_call.1
$region0: #{tpu_custom_call.1}
  #allocation0 [shape = 'u32[]', space=smem, size = 0x4, offset = 0x4, fixed_abs, tag = 'smem constant byte address 0x4 - core index']
  #allocation1 [shape = 'u32[72,128]{1,0:T(1,128)}', space=vmem, size = 0x9000, scoped, tag = 'internal scratch']
  %s0 = inlined_call_operand.vmem [shape: f32[16,32], index: 0, kind: input, shape index: {}]
  %s1 = inlined_call_operand.vmem [shape: s32[16,1], index: 1, kind: input, shape index: {}]
  %s2 = inlined_call_operand.hbm [shape: f32[1,1,128], index: 2, kind: output, shape index: {}]
  %s3 = sld [smem:[#allocation0]]
  $region18: #{tpu_custom_call.1} parent=0
    _
  %s5 = ssub.s32 1, %s3
  %s6 = scalar_select 0, %s5, %s3
  $region1: #{tpu_custom_call.1} parent=0
    #allocation2 [shape = 'u8[512]{0}', space=vmem, size = 0x400, scoped, tag = 'output window, operand 0, single buffered']
    #allocation3 [shape = 's32[1]{0}', space=sflag, size = 0x4, scoped, tag = 'scoped memory for tpu_custom_call.1']
    %7 = vsyncpa [#allocation3], 0
    // Predicated region
    $region2: #{tpu_custom_call.1} parent=1 // pred_check
      _
    $region3: #{tpu_custom_call.1} parent=1 // pred_check_branch
      %9 = sbr.rel (0) target = $region5
    $region4: #{tpu_custom_call.1} parent=1 // pred_region
      _
    $region5: #{tpu_custom_call.1} parent=1 // pred_fallthru
      _
    // Predicated region
    $region6: #{tpu_custom_call.1} parent=1 // pred_check
      _
    $region7: #{tpu_custom_call.1} parent=1 // pred_check_branch
      %11 = sbr.rel (0) target = $region9
    $region8: #{tpu_custom_call.1} parent=1 // pred_region
      _
    $region9: #{tpu_custom_call.1} parent=1 // pred_fallthru
      _
    %v12 = vld [vmem:[%s0] sm:$0xff]
    %v13 = vld [vmem:[%s0 + $0x8] sm:$0xff]
    %v14 = vld [vmem:[%s1] sm:$0xff]
    %v15 = vld [vmem:[%s1 + $0x8] sm:$0xff]
    %v16 = vlaneseq
    %v17 = vand.u32 %v16, 127
    %18 = vset.pattern.permute.xlu0 0
    %19 = vperm.xlu0 %18, %v14
    %v20 = vpop.permute.xlu0 %19
    %21 = vset.pattern.permute.xlu0 0
    %22 = vperm.xlu0 %21, %v15
    %v23 = vpop.permute.xlu0 %22
    %vm24 = vcmp.eq.s32.totalorder %v17, %v20
    %vm25 = vcmp.eq.s32.totalorder %v17, %v23
    %v26 = vsel %vm24, %v12, -inf
    %v27 = vsel %vm25, %v13, -inf
    %vm28 = vcmask 261120
    %v29 = vsel %vm28, %v26, -inf
    %30 = vmax.xlane.f32.xlu0 %v29
    %v31 = vpop.xlane.xlu0 %30
    %v32 = vsel %vm28, %v27, -inf
    %33 = vmax.xlane.f32.xlu0 %v32
    %v34 = vpop.xlane.xlu0 %33
    %vm35 = vcmp.gt.f32.partialorder %v12, %v31
    %vm36 = vcmp.gt.f32.partialorder %v13, %v34
    %v37 = vsel %vm35, 1, 0
    %v38 = vsel %vm36, 1, 0
    %vm39 = vcmp.eq.f32.partialorder %v12, %v31
    %vm40 = vcmp.eq.f32.partialorder %v13, %v34
    %vm41 = vcmp.lt.s32.totalorder %v17, %v20
    %vm42 = vcmp.lt.s32.totalorder %v17, %v23
    %vm43 = vmand %vm39, %vm41
    %vm44 = vmand %vm40, %vm42
    %v45 = vsel %vm43, 1, 0
    %v46 = vsel %vm44, 1, 0
    %v47 = vadd.s32 %v37, %v45
    %v48 = vadd.s32 %v38, %v46
    %v49 = vsel %vm28, %v47, 0
    %v50 = vand.u32 %v49, 65535
    %v51 = vshrl.u32 %v49, 16
    %v52 = vcvt.s32.f32 %v50
    %v53 = vcvt.s32.f32 %v51
    %54 = vadd.xlane.f32.xlu0 %v52
    %v55 = vpop.xlane.xlu0 %54
    %56 = vadd.xlane.f32.xlu0 %v53
    %v57 = vpop.xlane.xlu0 %56
    %v58 = vcvt.f32.s32 %v55
    %v59 = vcvt.f32.s32 %v57
    %v60 = vshll.u32 %v59, 16
    %v61 = vadd.s32 %v60, %v58
    %v62 = vsel %vm28, %v48, 0
    %v63 = vand.u32 %v62, 65535
    %v64 = vshrl.u32 %v62, 16
    %v65 = vcvt.s32.f32 %v63
    %v66 = vcvt.s32.f32 %v64
    %67 = vadd.xlane.f32.xlu0 %v65
    %v68 = vpop.xlane.xlu0 %67
    %69 = vadd.xlane.f32.xlu0 %v66
    %v70 = vpop.xlane.xlu0 %69
    %v71 = vcvt.f32.s32 %v68
    %v72 = vcvt.f32.s32 %v70
    %v73 = vshll.u32 %v72, 16
    %v74 = vadd.s32 %v73, %v71
    %vm75 = vcmp.lt.s32.totalorder %v61, 3
    %vm76 = vcmp.lt.s32.totalorder %v74, 3
    %v77 = vsel %vm75, 1, 0
    %v78 = vsel %vm76, 1, 0
    %v79 = vcvt.s32.f32 %v77
    %v80 = vcvt.s32.f32 %v78
    %vm81 = vcmask 7168
    %v82 = vsel %vm81, %v79, 0.0
    %v83 = vsel %vm81, %v80, 0.0
    %v84 = vadd.f32 %v82, %v83
    %85 = vadd.xlane.f32.xlu0 %v84
    %v86 = vpop.xlane.xlu0 %85
    %v87 = vrot.slane %v86, 4
    %v88 = vadd.f32 %v86, %v87
    %v89 = vrot.slane %v88, 2
    %v90 = vadd.f32 %v88, %v89
    %v91 = vrot.slane %v90, 1
    %v92 = vadd.f32 %v90, %v91
    %s93 = vtos %v92
    %v94 = vstv %s93
    %95 = vst [vmem:[#allocation2] sm:$0x1] %v94
    // Predicated region
    $region10: #{tpu_custom_call.1} parent=1 // pred_check
      _
    $region11: #{tpu_custom_call.1} parent=1 // pred_check_branch
      %97 = sbr.rel (0) target = $region13
    $region12: #{tpu_custom_call.1} parent=1 // pred_region
      %99 = vsyncadd [#allocation3], 0
      %s101 = sshll.u32 [#allocation2], 4
      %s102 = int_to_ptr.vmem [resolvable:$true] %s101
      %s103 = sshll.u32 %s2, 4
      %s104 = int_to_ptr.hbm [resolvable:$true] %s103
      %106 = dma.vmem_to_hbm [thread:$0]  %s102, 16, %s104, [#allocation3]
    $region13: #{tpu_custom_call.1} parent=1 // pred_fallthru
      _
    // Predicated region
    $region14: #{tpu_custom_call.1} parent=1 // pred_check
      _
    $region15: #{tpu_custom_call.1} parent=1 // pred_check_branch
      %108 = sbr.rel (0) target = $region17
    $region16: #{tpu_custom_call.1} parent=1 // pred_region
      %110 = dma.done [#allocation3], 16
    $region17: #{tpu_custom_call.1} parent=1 // pred_fallthru
      _
    %111 = vsyncpa [#allocation3], 1

</llo_original>
